<compile_context>
chip_gen: v7x
topology: tpu7x:2x2x1
jax: 0.10.0
libtpu: 0.0.40
codegen_flags: <defaults>
</compile_context>

<pallas_src>
import jax
import jax.numpy as jnp
from jax.experimental import pallas as pl
from jax.experimental.pallas import tpu as pltpu


# ----------------------------- Pallas kernel -------------------------------

def _affine_kernel(x_ref, scale_ref, bias_ref, o_ref):
    # y = x * scale + bias ; scale/bias are (1, cols) rows broadcast over the
    # row-tile. All per-feature divides are hoisted into `scale` on the host.
    o_ref[...] = x_ref[...] * scale_ref[...] + bias_ref[...]


# cache of compiled pallas_call callables keyed on static shape/dtype
_AFFINE_CALL_CACHE = {}


def _get_affine_call(rows, cols, tile_rows, dtype):
    key = (rows, cols, tile_rows, jnp.dtype(dtype).name)
    call = _AFFINE_CALL_CACHE.get(key)
    if call is None:
        grid = (pl.cdiv(rows, tile_rows),)
        call = pl.pallas_call(
            _affine_kernel,
            out_shape=jax.ShapeDtypeStruct((rows, cols), dtype),
            grid_spec=pltpu.PrefetchScalarGridSpec(
                num_scalar_prefetch=0,
                grid=grid,
                in_specs=[
                    pl.BlockSpec((tile_rows, cols), lambda i: (i, 0)),  # X tile
                    pl.BlockSpec((1, cols), lambda i: (0, 0)),          # scale
                    pl.BlockSpec((1, cols), lambda i: (0, 0)),          # bias
                ],
                out_specs=pl.BlockSpec((tile_rows, cols), lambda i: (i, 0)),
            ),
            compiler_params=pltpu.CompilerParams(
                dimension_semantics=("parallel",)),
        )
        _AFFINE_CALL_CACHE[key] = call
    return call


def _affine_2d(x, scale, bias):
    """y[n, f] = x[n, f] * scale[f] + bias[f], lane-dense Pallas path."""
    n, f = x.shape
    dtype = x.dtype
    scale = jnp.asarray(scale, dtype)
    bias = jnp.asarray(bias, dtype)

    # Lane-dense repack: group `128 // f` points per lane row so the last dim
    # is 128 (full-width vector stores, 16x fewer vregs for F=8).
    if 0 < f <= 128 and 128 % f == 0:
        group = 128 // f
    else:
        group = 1

    if group > 1:
        rows = -(-n // group)                    # cdiv
        pad = rows * group - n
        xp = jnp.pad(x, ((0, pad), (0, 0))) if pad else x
        cols = group * f
        x2 = xp.reshape(rows, cols)
        s2 = jnp.tile(scale, group)
        b2 = jnp.tile(bias, group)
    else:
        rows, cols, pad = n, f, 0
        x2, s2, b2 = x, scale, bias

    # Big row tiles: full extent for small inputs (grid=(1,)), 1024-row blocks
    # for large point clouds (multiple of 8; ~512 KiB/block -> ~2 MiB VMEM
    # double-buffered, well under the v7x 64 MiB ceiling).
    tile_rows = rows if rows <= 1024 else 1024

    y2 = _get_affine_call(rows, cols, tile_rows, dtype)(
        x2, s2.reshape(1, cols), b2.reshape(1, cols))

    if group > 1:
        y = y2.reshape(rows * group, f)
        if pad:
            y = y[:n]
        return y
    return y2


# ----------------------------- Model wrapper -------------------------------

class StandardScalerParams:
    """Deterministic synthetic standard-scaler parameters."""

    def __init__(self, n_features, offset):
        self.mean = (jnp.arange(n_features, dtype=jnp.float32) * 0.25
                     + jnp.float32(offset))
        self.std = (jnp.arange(n_features, dtype=jnp.float32) * 0.1
                    + jnp.float32(1.0))


class Model:
    """JAX/Pallas port of mario.Model (abstract base)."""

    def __init__(self, input_scaler, output_scaler):
        self.input_scaler = input_scaler
        self.output_scaler = output_scaler

    def forward(self, x):
        # TODO(synk): base-class forward raises NotImplementedError in PyTorch;
        # identity placeholder stands in for a subclass network.
        return x

    def predict(self, x):
        in_s, out_s = self.input_scaler, self.output_scaler
        if type(self).forward is Model.forward:
            # Identity forward: fold both scalers into a single affine kernel.
            #   y = x * (std_out/std_in) + (mean_out - mean_in*std_out/std_in)
            scale = out_s.std / in_s.std
            bias = out_s.mean - in_s.mean * scale
            return _affine_2d(x, scale, bias)

        # Subclass with a real forward: transform -> forward -> inverse.
        # Reciprocal of std is hoisted to the host (no in-kernel divide).
        inv_std = 1.0 / in_s.std
        x_scaled = _affine_2d(x, inv_std, -in_s.mean * inv_std)
        yhat = self.forward(x_scaled)
        return _affine_2d(yhat, out_s.std, out_s.mean)


# --------------------------------- main -------------------------------------

if __name__ == "__main__":
    N, F = 128, 8  # small AirfRANS-like point cloud: 128 points, 8 features
    key = jax.random.PRNGKey(0)
    x = jax.random.normal(key, (N, F), dtype=jnp.float32) * 3.0 + 1.5

    input_scaler = StandardScalerParams(F, offset=0.5)
    output_scaler = StandardScalerParams(F, offset=-0.25)

    model = Model(input_scaler, output_scaler)
    y = model.predict(x)
    y = jax.block_until_ready(y)

    # reference check in plain JAX (unfused math)
    ref = ((x - input_scaler.mean[None, :]) / input_scaler.std[None, :]
           ) * output_scaler.std[None, :] + output_scaler.mean[None, :]
    assert y.shape == ref.shape
    assert jnp.allclose(y, ref, atol=1e-5, rtol=1e-5), "mismatch vs reference"

    print("KERNEL_OK")
</pallas_src>

<mosaic_0001>
module attributes {stable_mosaic.version = 11 : i64} {
  func.func @_affine_kernel(%arg0: i32, %arg1: memref<8x128xf32, #tpu.memory_space<vmem>>, %arg2: memref<1x128xf32, #tpu.memory_space<vmem>>, %arg3: memref<1x128xf32, #tpu.memory_space<vmem>>, %arg4: memref<8x128xf32, #tpu.memory_space<vmem>>) attributes {dimension_semantics = [#tpu.dimension_semantics<parallel>], iteration_bounds = array<i64: 1>, scalar_prefetch = 0 : i64, scratch_operands = 0 : i64, tpu.core_type = #tpu.core_type<tc>, window_params = [{transform_indices = @transform_0, window_bounds = array<i64: 8, 128>}, {pipeline_mode = #tpu.pipeline_mode<synchronous>, transform_indices = @transform_1, window_bounds = array<i64: 1, 128>}, {pipeline_mode = #tpu.pipeline_mode<synchronous>, transform_indices = @transform_2, window_bounds = array<i64: 1, 128>}, {transform_indices = @transform_3, window_bounds = array<i64: 8, 128>}]} {
    %c0 = arith.constant 0 : index
    %c0_0 = arith.constant 0 : index
    %0 = vector.load %arg1[%c0, %c0_0] : memref<8x128xf32, #tpu.memory_space<vmem>>, vector<8x128xf32>
    %c0_1 = arith.constant 0 : index
    %c0_2 = arith.constant 0 : index
    %1 = vector.load %arg2[%c0_1, %c0_2] : memref<1x128xf32, #tpu.memory_space<vmem>>, vector<1x128xf32>
    %2 = vector.broadcast %1 : vector<1x128xf32> to vector<8x128xf32>
    %3 = arith.mulf %0, %2 : vector<8x128xf32>
    %c0_3 = arith.constant 0 : index
    %c0_4 = arith.constant 0 : index
    %4 = vector.load %arg3[%c0_3, %c0_4] : memref<1x128xf32, #tpu.memory_space<vmem>>, vector<1x128xf32>
    %5 = vector.broadcast %4 : vector<1x128xf32> to vector<8x128xf32>
    %6 = arith.addf %3, %5 : vector<8x128xf32>
    %c0_5 = arith.constant 0 : index
    %c0_6 = arith.constant 0 : index
    %7 = vector.load %arg4[%c0_5, %c0_6] : memref<8x128xf32, #tpu.memory_space<vmem>>, vector<8x128xf32>
    tpu.vector_store %arg4[%c0_5, %c0_6], %6 {strides = array<i32>} : memref<8x128xf32, #tpu.memory_space<vmem>>, vector<8x128xf32>,
    return
  }
  func.func @transform_0(%arg0: i32) -> (i32, i32) {
    %c0_i32 = arith.constant 0 : i32
    %c0_i32_0 = arith.constant 0 : i32
    return %arg0, %c0_i32 : i32, i32
  }
  func.func @transform_1(%arg0: i32) -> (i32, i32) {
    %c0_i32 = arith.constant 0 : i32
    %c0_i32_0 = arith.constant 0 : i32
    %c0_i32_1 = arith.constant 0 : i32
    return %c0_i32, %c0_i32_0 : i32, i32
  }
  func.func @transform_2(%arg0: i32) -> (i32, i32) {
    %c0_i32 = arith.constant 0 : i32
    %c0_i32_0 = arith.constant 0 : i32
    %c0_i32_1 = arith.constant 0 : i32
    return %c0_i32, %c0_i32_0 : i32, i32
  }
  func.func @transform_3(%arg0: i32) -> (i32, i32) {
    %c0_i32 = arith.constant 0 : i32
    %c0_i32_0 = arith.constant 0 : i32
    return %arg0, %c0_i32 : i32, i32
  }
}

</mosaic_0001>

<llo_original>
// kernel: tpu_custom_call.1
$region0: #{tpu_custom_call.1}
  #allocation0 [shape = 'u32[]', space=smem, size = 0x4, offset = 0x4, fixed_abs, tag = 'smem constant byte address 0x4 - core index']
  #allocation1 [shape = 'u32[144,128]{1,0:T(1,128)}', space=vmem, size = 0x12000, scoped, tag = 'internal scratch']
  %s0 = inlined_call_operand.hbm [shape: f32[8,128], index: 0, kind: input, shape index: {}]
  %s1 = inlined_call_operand.vmem [shape: f32[1,128], index: 1, kind: input, shape index: {}]
  %s2 = inlined_call_operand.vmem [shape: f32[1,128], index: 2, kind: input, shape index: {}]
  %s3 = inlined_call_operand.hbm [shape: f32[8,128], index: 3, kind: output, shape index: {}]
  %s4 = sld [smem:[#allocation0]]
  $region26: #{tpu_custom_call.1} parent=0
    _
  %s6 = ssub.s32 1, %s4
  %s7 = scalar_select 0, %s6, %s4
  $region1: #{tpu_custom_call.1} parent=0
    #allocation2 [shape = 'u8[4096]{0}', space=vmem, size = 0x1000, scoped, tag = 'input window, operand 0, single buffered']
    #allocation3 [shape = 's32[1]{0}', space=sflag, size = 0x4, scoped, tag = 'scoped memory for tpu_custom_call.1']
    #allocation4 [shape = 's32[1]{0}', space=sflag, size = 0x4, scoped, tag = 'scoped memory for tpu_custom_call.1']
    #allocation5 [shape = 'u8[4096]{0}', space=vmem, size = 0x1000, scoped, tag = 'output window, operand 0, single buffered']
    %8 = vsyncpa [#allocation3], 0
    %9 = vsyncpa [#allocation4], 0
    // Predicated region
    $region2: #{tpu_custom_call.1} parent=1 // pred_check
      _
    $region3: #{tpu_custom_call.1} parent=1 // pred_check_branch
      %11 = sbr.rel (0) target = $region5
    $region4: #{tpu_custom_call.1} parent=1 // pred_region
      %s13 = ssub.s32 128, 128
      %14 = vsyncadd [#allocation3], %s13
      %s16 = sshll.u32 [#allocation2], 4
      %s17 = int_to_ptr.vmem [resolvable:$true] %s16
      %19 = dma.hbm_to_vmem [thread:$0]  %s0, 128, %s17, [#allocation3]
    $region5: #{tpu_custom_call.1} parent=1 // pred_fallthru
      _
    // Predicated region
    $region6: #{tpu_custom_call.1} parent=1 // pred_check
      _
    $region7: #{tpu_custom_call.1} parent=1 // pred_check_branch
      %21 = sbr.rel (0) target = $region9
    $region8: #{tpu_custom_call.1} parent=1 // pred_region
      _
    $region9: #{tpu_custom_call.1} parent=1 // pred_fallthru
      _
    // Predicated region
    $region10: #{tpu_custom_call.1} parent=1 // pred_check
      _
    $region11: #{tpu_custom_call.1} parent=1 // pred_check_branch
      %23 = sbr.rel (0) target = $region13
    $region12: #{tpu_custom_call.1} parent=1 // pred_region
      _
    $region13: #{tpu_custom_call.1} parent=1 // pred_fallthru
      _
    // Predicated region
    $region14: #{tpu_custom_call.1} parent=1 // pred_check
      _
    $region15: #{tpu_custom_call.1} parent=1 // pred_check_branch
      %25 = sbr.rel (0) target = $region17
    $region16: #{tpu_custom_call.1} parent=1 // pred_region
      %26 = dma.done [#allocation3], 128
    $region17: #{tpu_custom_call.1} parent=1 // pred_fallthru
      _
    %v27 = vld [vmem:[#allocation2] sm:$0xff]
    %v28 = vld [vmem:[%s1] sm:$0x1]
    %v30 = vlaneseq
    %v31 = vshrl.u32 %v30, 7
    %v32 = vsub.s32 0, %v31
    %v33 = vrot.slane %v28, %v32
    %v35 = vmul.f32 %v27, %v33
    %v36 = vld [vmem:[%s2] sm:$0x1]
    %v38 = vlaneseq
    %v39 = vshrl.u32 %v38, 7
    %v40 = vsub.s32 0, %v39
    %v41 = vrot.slane %v36, %v40
    %v43 = vadd.f32 %v35, %v41
    %44 = vst [vmem:[#allocation5] sm:$0xff] %v43
    // Predicated region
    $region18: #{tpu_custom_call.1} parent=1 // pred_check
      _
    $region19: #{tpu_custom_call.1} parent=1 // pred_check_branch
      %46 = sbr.rel (0) target = $region21
    $region20: #{tpu_custom_call.1} parent=1 // pred_region
      %s48 = ssub.s32 128, 128
      %49 = vsyncadd [#allocation4], %s48
      %s51 = sshll.u32 [#allocation5], 4
      %s52 = int_to_ptr.vmem [resolvable:$true] %s51
      %54 = dma.vmem_to_hbm [thread:$0]  %s52, 128, %s3, [#allocation4]
    $region21: #{tpu_custom_call.1} parent=1 // pred_fallthru
      _
    // Predicated region
    $region22: #{tpu_custom_call.1} parent=1 // pred_check
      _
    $region23: #{tpu_custom_call.1} parent=1 // pred_check_branch
      %56 = sbr.rel (0) target = $region25
    $region24: #{tpu_custom_call.1} parent=1 // pred_region
      %57 = dma.done [#allocation4], 128
    $region25: #{tpu_custom_call.1} parent=1 // pred_fallthru
      _
    %58 = vsyncpa [#allocation3], 1
    %59 = vsyncpa [#allocation4], 1

</llo_original>
